<compile_context>
chip_gen: v7x
topology: tpu7x:2x2x1
jax: 0.10.0
libtpu: 0.0.40
codegen_flags: <defaults>
</compile_context>

<pallas_src>
import functools
import math

import jax
import jax.numpy as jnp
from jax.experimental import pallas as pl
from jax.experimental.pallas import tpu as pltpu

_AMIN = 1e-10                      # torchaudio AmplitudeToDB amin
_DB_SCALE = 10.0 / math.log(10.0)  # 10*log10(x) == _DB_SCALE * ln(x)


def _round_up(x, m):
    return ((x + m - 1) // m) * m


def _linear_interp_matrix(t_in, t_out):
    """(t_in, t_out) matrix reproducing F.interpolate(mode='linear', align_corners=True)."""
    j = jnp.arange(t_out, dtype=jnp.float32)
    if t_out > 1:
        pos = j * (t_in - 1) / (t_out - 1)
    else:
        pos = jnp.zeros_like(j)
    i0 = jnp.floor(pos).astype(jnp.int32)
    i1 = jnp.minimum(i0 + 1, t_in - 1)
    w = pos - i0.astype(jnp.float32)
    cols = jnp.arange(t_out)
    mat = jnp.zeros((t_in, t_out), dtype=jnp.float32)
    mat = mat.at[i0, cols].add(1.0 - w)
    mat = mat.at[i1, cols].add(w)
    return mat


def _choose_tile_m(bm, t_in, t_out_pad, w_itemsize, budget_bytes, max_tile=1024):
    """Row-tile size: biggest multiple of 8 that fits the VMEM budget, keeps >= 2
    grid steps (v7x has 2 TensorCores), and (preferably) divides bm so no
    row-padding HBM copy of the input is needed."""
    w_bytes = 2 * t_in * t_out_pad * w_itemsize          # W, worst case double-buffered
    per_row = 2 * 4 * (t_in + t_out_pad)                 # f32 x-tile + y-tile, double-buffered
    avail = budget_bytes - w_bytes
    cap = max(8, avail // per_row) if avail > 8 * per_row else 8
    cap = int(min(cap, max_tile))
    if cap >= 256:
        cap -= cap % 256                                 # fill 256-wide MXU passes (v6e/v7x)
    else:
        cap -= cap % 8
    cap = max(8, cap)
    cap = min(cap, _round_up(bm, 8))
    if bm >= 16:                                         # keep >= 2 row tiles for v7x megacore
        cap = min(cap, _round_up((bm + 1) // 2, 8))
    cap = max(8, cap)
    # Prefer a tile that divides bm exactly (no HBM row-pad copy of the input).
    t = (cap // 8) * 8
    while t >= 8:
        if bm % t == 0:
            if t >= max(8, cap // 4):
                return t
            break
        t -= 8
    return cap


def _mel_kernel(scal_ref, x_ref, w_ref, y_ref, psum_ref, psq_ref, *, matmul_dtype):
    """One streamed row tile: dB + (fused top_db clamp / trim_noise) + MXU time resize
    + per-tile sum / sum-of-squares for the global normalization."""
    c = scal_ref[0]                       # db_min + noise_offset_db (hoisted, SMEM scalar)
    x = x_ref[...]                        # (tile_m, t_in) f32
    # AmplitudeToDB (power) via one EUP log, then the fused clamp/trim chain:
    #   max(max(x_db, db_floor) - db_min - noise_off, 0) == max(x_db - c, 0)
    # (db_floor <= db_min <= c when noise_offset_db >= 0).
    x_db = _DB_SCALE * jnp.log(jnp.maximum(x, _AMIN))
    x_db = jnp.maximum(x_db - c, 0.0)
    # resize_length: y[:, j] = sum_t x_db[:, t] * W[t, j]  (MXU, f32 accumulation)
    y = jnp.dot(x_db.astype(matmul_dtype), w_ref[...],
                preferred_element_type=jnp.float32)
    y_ref[...] = y.astype(y_ref.dtype)
    # Per-tile partial statistics (padded rows/cols of y are exact zeros).
    s = jnp.sum(y)
    sq = jnp.sum(y * y)
    psum_ref[...] = jnp.full((8, 128), s, jnp.float32)
    psq_ref[...] = jnp.full((8, 128), sq, jnp.float32)


def mel_spec_preprocessing(spec, *, top_db, noise_offset_db, n_target_time_frames,
                           tile_m=None, matmul_dtype=jnp.bfloat16, input_buffering=None):
    """spec: (B, n_mels, T) float32 power mel-spectrogram -> (B, n_mels, n_target_time_frames).

    matmul_dtype=jnp.float32 is an accuracy-only escape hatch (multiple MXU passes on
    v5e/v6e); the default bf16-in / f32-accumulate path is the right choice on all chips.
    input_buffering: optional buffer count (e.g. 3) to sweep on the streamed input tile.
    """
    if noise_offset_db < 0:
        # The fused max(x_db - c, 0) chain and the exact-zero row-padding invariant
        # both rely on a non-negative noise offset (it is a dB offset by definition).
        raise ValueError("noise_offset_db must be >= 0")

    b, n_mels, t_in = spec.shape
    t_out = int(n_target_time_frames)
    bm = b * n_mels
    spec2d = spec.reshape(bm, t_in).astype(jnp.float32)

    # --- Hoisted global reductions (log10 is monotone, so max/min commute with it) ---
    raw_max = jnp.max(spec2d)
    raw_min = jnp.min(spec2d)
    db_max = _DB_SCALE * jnp.log(jnp.maximum(raw_max, _AMIN))
    db_floor = db_max - jnp.float32(top_db)
    db_min = jnp.maximum(_DB_SCALE * jnp.log(jnp.maximum(raw_min, _AMIN)), db_floor)
    c = jnp.reshape(db_min + jnp.float32(noise_offset_db), (1,)).astype(jnp.float32)

    # --- Lane-dense padding of the OUTPUT time axis only ---
    t_out_pad = _round_up(t_out, 128)
    w = _linear_interp_matrix(t_in, t_out)
    w_pad = jnp.pad(w, ((0, 0), (0, t_out_pad - t_out))).astype(matmul_dtype)
    w_itemsize = jnp.dtype(matmul_dtype).itemsize

    # --- Per-generation VMEM budget (v7x: 64 MiB -> cap 48 MiB; v5e/v6e: 128 MiB) ---
    try:
        vmem_cap = int(pltpu.get_tpu_info().vmem_capacity_bytes)
    except Exception:
        vmem_cap = 64 * 1024 * 1024          # conservative (v7x-sized) fallback
    vmem_ceiling = (vmem_cap * 3) // 4       # 48 MiB on v7x, 96 MiB on v5e/v6e
    tile_budget = vmem_ceiling // 2

    if tile_m is None:
        tile_m = _choose_tile_m(bm, t_in, t_out_pad, w_itemsize, tile_budget)
    else:
        tile_m = max(8, int(tile_m) - int(tile_m) % 8)
        tile_m = min(tile_m, _round_up(bm, 8))

    bm_pad = _round_up(bm, tile_m)
    grid_m = bm_pad // tile_m

    # Zero-power padded rows map to exact zeros after the in-kernel chain, so they
    # never leak into the output or the partial statistics.  (Skipped entirely when
    # tile_m divides bm -- the common case by construction.)
    if bm_pad != bm:
        x_rows = jnp.pad(spec2d, ((0, bm_pad - bm), (0, 0)))
    else:
        x_rows = spec2d

    stats_bytes = 2 * 2 * 8 * 128 * 4
    working_set = (2 * 4 * tile_m * (t_in + t_out_pad)        # x in + y out, double-buffered
                   + 2 * w_itemsize * t_in * t_out_pad        # W (worst case 2 buffers)
                   + stats_bytes)
    vmem_limit = int(min(vmem_ceiling, max(32 * 1024 * 1024, 2 * working_set)))

    kernel = functools.partial(_mel_kernel, matmul_dtype=matmul_dtype)
    out_shape = (
        jax.ShapeDtypeStruct((bm_pad, t_out_pad), jnp.float32),
        jax.ShapeDtypeStruct((grid_m * 8, 128), jnp.float32),   # per-tile sum
        jax.ShapeDtypeStruct((grid_m * 8, 128), jnp.float32),   # per-tile sum of squares
    )

    def _build(x_mode, w_mode):
        def _spec(shape, idx, mode):
            if mode is None:
                return pl.BlockSpec(shape, idx)
            return pl.BlockSpec(shape, idx, pipeline_mode=mode)
        in_specs = [
            pl.BlockSpec(memory_space=pltpu.MemorySpace.SMEM),        # c (SMEM scalar)
            _spec((tile_m, t_in), lambda i: (i, 0), x_mode),          # streamed row tile
            _spec((t_in, t_out_pad), lambda i: (0, 0), w_mode),       # resident W
        ]
        out_specs = (
            pl.BlockSpec((tile_m, t_out_pad), lambda i: (i, 0)),
            pl.BlockSpec((8, 128), lambda i: (i, 0)),
            pl.BlockSpec((8, 128), lambda i: (i, 0)),
        )
        return pl.pallas_call(
            kernel,
            out_shape=out_shape,
            grid=(grid_m,),
            in_specs=in_specs,
            out_specs=out_specs,
            compiler_params=pltpu.CompilerParams(
                dimension_semantics=("parallel",),   # row tiles shard across TCs on v7x
                vmem_limit_bytes=vmem_limit,
            ),
        )

    x_mode = pl.Buffered(int(input_buffering)) if input_buffering else None
    try:
        # W never changes across grid steps -> request a single buffer for it.
        y_pad, psum, psq = _build(x_mode, pl.Buffered(1))(c, x_rows, w_pad)
    except Exception:
        # Fallback for jax versions that reject pipeline_mode / single buffering.
        y_pad, psum, psq = _build(None, None)(c, x_rows, w_pad)

    # --- normalize: global mean / unbiased std from the per-tile partials, then a
    #     single fused (y - mean) * inv_std pass over the valid output region ---
    y = y_pad[:bm, :t_out]
    n = bm * t_out                              # true element count (padding is exact zeros)
    total = jnp.sum(psum.reshape(grid_m, 8, 128)[:, 0, 0])
    total_sq = jnp.sum(psq.reshape(grid_m, 8, 128)[:, 0, 0])
    mean = total / jnp.float32(n)
    var = jnp.maximum(total_sq - total * mean, 0.0) / jnp.float32(max(n - 1, 1))  # torch.std(): N-1
    inv_std = 1.0 / (jnp.sqrt(var) + 1e-6)
    y = (y - mean) * inv_std
    return y.reshape(b, n_mels, t_out)


def _reference(spec, *, top_db, noise_offset_db, n_target_time_frames):
    """Pure-JAX mirror of the PyTorch pipeline (global reductions, unbiased std)."""
    x = spec.astype(jnp.float32)
    x_db = 10.0 * jnp.log10(jnp.maximum(x, _AMIN))
    x_db = jnp.maximum(x_db, jnp.max(x_db) - top_db)
    x_db = x_db - jnp.min(x_db)
    x_db = jnp.where(x_db < noise_offset_db, 0.0, x_db - noise_offset_db)
    t_in = x.shape[-1]
    t_out = n_target_time_frames
    j = jnp.arange(t_out, dtype=jnp.float32)
    pos = j * (t_in - 1) / (t_out - 1) if t_out > 1 else jnp.zeros_like(j)
    i0 = jnp.floor(pos).astype(jnp.int32)
    i1 = jnp.minimum(i0 + 1, t_in - 1)
    frac = pos - i0.astype(jnp.float32)
    y = x_db[..., i0] * (1.0 - frac) + x_db[..., i1] * frac
    mean = jnp.mean(y)
    var = jnp.sum(jnp.square(y - mean)) / (y.size - 1)
    return (y - mean) / (jnp.sqrt(var) + 1e-6)


if __name__ == "__main__":
    key = jax.random.PRNGKey(0)
    B, N_MELS, T = 2, 40, 64
    N_TARGET = 48
    TOP_DB = 80.0
    NOISE_OFFSET_DB = 10.0

    # Synthetic power spectrogram (non-negative), deterministic.
    amp = jax.random.normal(key, (B, N_MELS, T), dtype=jnp.float32)
    spec = amp * amp

    ref = _reference(spec, top_db=TOP_DB, noise_offset_db=NOISE_OFFSET_DB,
                     n_target_time_frames=N_TARGET)

    # Tolerance in units of the unit-std normalized output; loose enough to absorb
    # bf16-MXU rounding of ~70 dB-scale intermediates, tight enough that any
    # structural error (wrong stats / interpolation / scaling) would be O(1).
    TOL = 0.15

    # f32 interpolation-matmul path; explicit tile_m=32 forces a 3-step grid plus
    # the row-padding fallback path (80 -> 96 rows).
    out_f32 = mel_spec_preprocessing(
        spec, top_db=TOP_DB, noise_offset_db=NOISE_OFFSET_DB,
        n_target_time_frames=N_TARGET, tile_m=32, matmul_dtype=jnp.float32)
    out_f32 = jax.block_until_ready(out_f32)
    assert out_f32.shape == (B, N_MELS, N_TARGET)
    assert jnp.isfinite(out_f32).all()
    assert jnp.allclose(out_f32, ref, rtol=0.0, atol=TOL), \
        float(jnp.max(jnp.abs(out_f32 - ref)))

    # Default perf path: auto tile (divides B*n_mels -> no row-pad copy, 2 row tiles),
    # bf16 interpolation matmul on the MXU with f32 accumulation.
    out = mel_spec_preprocessing(
        spec, top_db=TOP_DB, noise_offset_db=NOISE_OFFSET_DB,
        n_target_time_frames=N_TARGET)
    out = jax.block_until_ready(out)
    assert out.shape == (B, N_MELS, N_TARGET)
    assert jnp.isfinite(out).all()
    assert abs(float(jnp.mean(out))) < 1e-3          # normalized to ~zero mean
    assert jnp.allclose(out, ref, rtol=0.0, atol=TOL), \
        float(jnp.max(jnp.abs(out - ref)))

    print("KERNEL_OK")
</pallas_src>

<mosaic_0001>
module attributes {stable_mosaic.version = 11 : i64} {
  func.func @_mel_kernel(%arg0: i32, %arg1: memref<1xf32, #tpu.memory_space<smem>>, %arg2: memref<32x64xf32, #tpu.memory_space<vmem>>, %arg3: memref<64x128xf32, #tpu.memory_space<vmem>>, %arg4: memref<32x128xf32, #tpu.memory_space<vmem>>, %arg5: memref<8x128xf32, #tpu.memory_space<vmem>>, %arg6: memref<8x128xf32, #tpu.memory_space<vmem>>) attributes {dimension_semantics = [#tpu.dimension_semantics<parallel>], iteration_bounds = array<i64: 3>, scalar_prefetch = 0 : i64, scratch_operands = 0 : i64, tpu.core_type = #tpu.core_type<tc>, window_params = [{transform_indices = @transform_0, window_bounds = array<i64: 1>}, {transform_indices = @transform_1, window_bounds = array<i64: 32, 64>}, {pipeline_mode = #tpu.pipeline_mode<synchronous>, transform_indices = @transform_2, window_bounds = array<i64: 64, 128>}, {transform_indices = @transform_3, window_bounds = array<i64: 32, 128>}, {transform_indices = @transform_4, window_bounds = array<i64: 8, 128>}, {transform_indices = @transform_5, window_bounds = array<i64: 8, 128>}]} {
    %c0 = arith.constant 0 : index
    %0 = memref.load %arg1[%c0] : memref<1xf32, #tpu.memory_space<smem>>
    %c0_0 = arith.constant 0 : index
    %c0_1 = arith.constant 0 : index
    %1 = vector.load %arg2[%c0_0, %c0_1] : memref<32x64xf32, #tpu.memory_space<vmem>>, vector<32x64xf32>
    %cst = arith.constant 1.000000e-10 : f32
    %2 = vector.broadcast %cst : f32 to vector<32x64xf32>
    %3 = arith.maximumf %1, %2 : vector<32x64xf32>
    %4 = math.log %3 : vector<32x64xf32>
    %cst_2 = arith.constant 4.34294462 : f32
    %5 = vector.broadcast %cst_2 : f32 to vector<32x64xf32>
    %6 = arith.mulf %5, %4 : vector<32x64xf32>
    %7 = vector.broadcast %0 : f32 to vector<32x64xf32>
    %8 = arith.subf %6, %7 : vector<32x64xf32>
    %cst_3 = arith.constant 0.000000e+00 : f32
    %9 = vector.broadcast %cst_3 : f32 to vector<32x64xf32>
    %10 = arith.maximumf %8, %9 : vector<32x64xf32>
    %c0_4 = arith.constant 0 : index
    %c0_5 = arith.constant 0 : index
    %11 = vector.load %arg3[%c0_4, %c0_5] : memref<64x128xf32, #tpu.memory_space<vmem>>, vector<64x128xf32>
    %cst_6 = arith.constant dense<0.000000e+00> : vector<32x128xf32>
    %12 = tpu.matmul %10, %11, %cst_6 {dimension_numbers = #tpu.dot_dimension_numbers<[1], [0], [0], [1], [0, 0, 1, 1], [], []>} : vector<32x64xf32>, vector<64x128xf32>, vector<32x128xf32> -> vector<32x128xf32>
    %c0_7 = arith.constant 0 : index
    %c0_8 = arith.constant 0 : index
    %13 = vector.load %arg4[%c0_7, %c0_8] : memref<32x128xf32, #tpu.memory_space<vmem>>, vector<32x128xf32>
    tpu.vector_store %arg4[%c0_7, %c0_8], %12 {strides = array<i32>} : memref<32x128xf32, #tpu.memory_space<vmem>>, vector<32x128xf32>,
    %14 = vector.shape_cast %12 : vector<32x128xf32> to vector<1x32x128xf32>
    %cst_9 = arith.constant dense<0.000000e+00> : vector<1xf32>
    %15 = vector.multi_reduction <add>, %14, %cst_9 [1, 2] : vector<1x32x128xf32> to vector<1xf32>
    %16 = vector.shape_cast %15 : vector<1xf32> to vector<1x1x1xf32>
    %17 = vector.extract %16[0, 0, 0] : f32 from vector<1x1x1xf32>
    %18 = arith.mulf %12, %12 : vector<32x128xf32>
    %19 = vector.shape_cast %18 : vector<32x128xf32> to vector<1x32x128xf32>
    %cst_10 = arith.constant dense<0.000000e+00> : vector<1xf32>
    %20 = vector.multi_reduction <add>, %19, %cst_10 [1, 2] : vector<1x32x128xf32> to vector<1xf32>
    %21 = vector.shape_cast %20 : vector<1xf32> to vector<1x1x1xf32>
    %22 = vector.extract %21[0, 0, 0] : f32 from vector<1x1x1xf32>
    %23 = vector.broadcast %17 : f32 to vector<8x128xf32>
    %c0_11 = arith.constant 0 : index
    %c0_12 = arith.constant 0 : index
    %24 = vector.load %arg5[%c0_11, %c0_12] : memref<8x128xf32, #tpu.memory_space<vmem>>, vector<8x128xf32>
    tpu.vector_store %arg5[%c0_11, %c0_12], %23 {strides = array<i32>} : memref<8x128xf32, #tpu.memory_space<vmem>>, vector<8x128xf32>,
    %25 = vector.broadcast %22 : f32 to vector<8x128xf32>
    %c0_13 = arith.constant 0 : index
    %c0_14 = arith.constant 0 : index
    %26 = vector.load %arg6[%c0_13, %c0_14] : memref<8x128xf32, #tpu.memory_space<vmem>>, vector<8x128xf32>
    tpu.vector_store %arg6[%c0_13, %c0_14], %25 {strides = array<i32>} : memref<8x128xf32, #tpu.memory_space<vmem>>, vector<8x128xf32>,
    return
  }
  func.func @transform_0(%arg0: i32) -> i32 {
    %c0_i32 = arith.constant 0 : i32
    %c0_i32_0 = arith.constant 0 : i32
    return %c0_i32 : i32
  }
  func.func @transform_1(%arg0: i32) -> (i32, i32) {
    %c0_i32 = arith.constant 0 : i32
    %c0_i32_0 = arith.constant 0 : i32
    return %arg0, %c0_i32 : i32, i32
  }
  func.func @transform_2(%arg0: i32) -> (i32, i32) {
    %c0_i32 = arith.constant 0 : i32
    %c0_i32_0 = arith.constant 0 : i32
    %c0_i32_1 = arith.constant 0 : i32
    return %c0_i32, %c0_i32_0 : i32, i32
  }
  func.func @transform_3(%arg0: i32) -> (i32, i32) {
    %c0_i32 = arith.constant 0 : i32
    %c0_i32_0 = arith.constant 0 : i32
    return %arg0, %c0_i32 : i32, i32
  }
  func.func @transform_4(%arg0: i32) -> (i32, i32) {
    %c0_i32 = arith.constant 0 : i32
    %c0_i32_0 = arith.constant 0 : i32
    return %arg0, %c0_i32 : i32, i32
  }
  func.func @transform_5(%arg0: i32) -> (i32, i32) {
    %c0_i32 = arith.constant 0 : i32
    %c0_i32_0 = arith.constant 0 : i32
    return %arg0, %c0_i32 : i32, i32
  }
}

module attributes {stable_mosaic.version = 11 : i64} {
  func.func @_mel_kernel(%arg0: i32, %arg1: memref<1xf32, #tpu.memory_space<smem>>, %arg2: memref<32x64xf32, #tpu.memory_space<vmem>>, %arg3: memref<64x128xf32, #tpu.memory_space<vmem>>, %arg4: memref<32x128xf32, #tpu.memory_space<vmem>>, %arg5: memref<8x128xf32, #tpu.memory_space<vmem>>, %arg6: memref<8x128xf32, #tpu.memory_space<vmem>>) attributes {dimension_semantics = [#tpu.dimension_semantics<parallel>], iteration_bounds = array<i64: 3>, scalar_prefetch = 0 : i64, scratch_operands = 0 : i64, tpu.core_type = #tpu.core_type<tc>, window_params = [{transform_indices = @transform_0, window_bounds = array<i64: 1>}, {transform_indices = @transform_1, window_bounds = array<i64: 32, 64>}, {pipeline_mode = #tpu.pipeline_mode<synchronous>, transform_indices = @transform_2, window_bounds = array<i64: 64, 128>}, {transform_indices = @transform_3, window_bounds = array<i64: 32, 128>}, {transform_indices = @transform_4, window_bounds = array<i64: 8, 128>}, {transform_indices = @transform_5, window_bounds = array<i64: 8, 128>}]} {
    %c0 = arith.constant 0 : index
    %0 = memref.load %arg1[%c0] : memref<1xf32, #tpu.memory_space<smem>>
    %c0_0 = arith.constant 0 : index
    %c0_1 = arith.constant 0 : index
    %1 = vector.load %arg2[%c0_0, %c0_1] : memref<32x64xf32, #tpu.memory_space<vmem>>, vector<32x64xf32>
    %cst = arith.constant 1.000000e-10 : f32
    %2 = vector.broadcast %cst : f32 to vector<32x64xf32>
    %3 = arith.maximumf %1, %2 : vector<32x64xf32>
    %4 = math.log %3 : vector<32x64xf32>
    %cst_2 = arith.constant 4.34294462 : f32
    %5 = vector.broadcast %cst_2 : f32 to vector<32x64xf32>
    %6 = arith.mulf %5, %4 : vector<32x64xf32>
    %7 = vector.broadcast %0 : f32 to vector<32x64xf32>
    %8 = arith.subf %6, %7 : vector<32x64xf32>
    %cst_3 = arith.constant 0.000000e+00 : f32
    %9 = vector.broadcast %cst_3 : f32 to vector<32x64xf32>
    %10 = arith.maximumf %8, %9 : vector<32x64xf32>
    %c0_4 = arith.constant 0 : index
    %c0_5 = arith.constant 0 : index
    %11 = vector.load %arg3[%c0_4, %c0_5] : memref<64x128xf32, #tpu.memory_space<vmem>>, vector<64x128xf32>
    %cst_6 = arith.constant dense<0.000000e+00> : vector<32x128xf32>
    %12 = tpu.matmul %10, %11, %cst_6 {dimension_numbers = #tpu.dot_dimension_numbers<[1], [0], [0], [1], [0, 0, 1, 1], [], []>} : vector<32x64xf32>, vector<64x128xf32>, vector<32x128xf32> -> vector<32x128xf32>
    %c0_7 = arith.constant 0 : index
    %c0_8 = arith.constant 0 : index
    %13 = vector.load %arg4[%c0_7, %c0_8] : memref<32x128xf32, #tpu.memory_space<vmem>>, vector<32x128xf32>
    tpu.vector_store %arg4[%c0_7, %c0_8], %12 {strides = array<i32>} : memref<32x128xf32, #tpu.memory_space<vmem>>, vector<32x128xf32>,
    %14 = vector.shape_cast %12 : vector<32x128xf32> to vector<1x32x128xf32>
    %cst_9 = arith.constant dense<0.000000e+00> : vector<1xf32>
    %15 = vector.multi_reduction <add>, %14, %cst_9 [1, 2] : vector<1x32x128xf32> to vector<1xf32>
    %16 = vector.shape_cast %15 : vector<1xf32> to vector<1x1x1xf32>
    %17 = vector.extract %16[0, 0, 0] : f32 from vector<1x1x1xf32>
    %18 = arith.mulf %12, %12 : vector<32x128xf32>
    %19 = vector.shape_cast %18 : vector<32x128xf32> to vector<1x32x128xf32>
    %cst_10 = arith.constant dense<0.000000e+00> : vector<1xf32>
    %20 = vector.multi_reduction <add>, %19, %cst_10 [1, 2] : vector<1x32x128xf32> to vector<1xf32>
    %21 = vector.shape_cast %20 : vector<1xf32> to vector<1x1x1xf32>
    %22 = vector.extract %21[0, 0, 0] : f32 from vector<1x1x1xf32>
    %23 = vector.broadcast %17 : f32 to vector<8x128xf32>
    %c0_11 = arith.constant 0 : index
    %c0_12 = arith.constant 0 : index
    %24 = vector.load %arg5[%c0_11, %c0_12] : memref<8x128xf32, #tpu.memory_space<vmem>>, vector<8x128xf32>
    tpu.vector_store %arg5[%c0_11, %c0_12], %23 {strides = array<i32>} : memref<8x128xf32, #tpu.memory_space<vmem>>, vector<8x128xf32>,
    %25 = vector.broadcast %22 : f32 to vector<8x128xf32>
    %c0_13 = arith.constant 0 : index
    %c0_14 = arith.constant 0 : index
    %26 = vector.load %arg6[%c0_13, %c0_14] : memref<8x128xf32, #tpu.memory_space<vmem>>, vector<8x128xf32>
    tpu.vector_store %arg6[%c0_13, %c0_14], %25 {strides = array<i32>} : memref<8x128xf32, #tpu.memory_space<vmem>>, vector<8x128xf32>,
    return
  }
  func.func @transform_0(%arg0: i32) -> i32 {
    %c0_i32 = arith.constant 0 : i32
    %c0_i32_0 = arith.constant 0 : i32
    return %c0_i32 : i32
  }
  func.func @transform_1(%arg0: i32) -> (i32, i32) {
    %c0_i32 = arith.constant 0 : i32
    %c0_i32_0 = arith.constant 0 : i32
    return %arg0, %c0_i32 : i32, i32
  }
  func.func @transform_2(%arg0: i32) -> (i32, i32) {
    %c0_i32 = arith.constant 0 : i32
    %c0_i32_0 = arith.constant 0 : i32
    %c0_i32_1 = arith.constant 0 : i32
    return %c0_i32, %c0_i32_0 : i32, i32
  }
  func.func @transform_3(%arg0: i32) -> (i32, i32) {
    %c0_i32 = arith.constant 0 : i32
    %c0_i32_0 = arith.constant 0 : i32
    return %arg0, %c0_i32 : i32, i32
  }
  func.func @transform_4(%arg0: i32) -> (i32, i32) {
    %c0_i32 = arith.constant 0 : i32
    %c0_i32_0 = arith.constant 0 : i32
    return %arg0, %c0_i32 : i32, i32
  }
  func.func @transform_5(%arg0: i32) -> (i32, i32) {
    %c0_i32 = arith.constant 0 : i32
    %c0_i32_0 = arith.constant 0 : i32
    return %arg0, %c0_i32 : i32, i32
  }
}

</mosaic_0001>

<llo_original>
// kernel: tpu_custom_call.1
$region0: #{tpu_custom_call.1}
  #allocation0 [shape = 'u32[]', space=smem, size = 0x4, offset = 0x4, fixed_abs, tag = 'smem constant byte address 0x4 - core index']
  #allocation1 [shape = 'u32[144,128]{1,0:T(1,128)}', space=vmem, size = 0x12000, scoped, tag = 'internal scratch']
  #allocation2 [shape = 'f32[1]{0:T(128)S(6)}', space=smem, size = 0x200, scoped, tag = 'scoped memory for tpu_custom_call.1']
  %s0 = inlined_call_operand.<no memory space> [shape: f32[1], index: 0, kind: input, shape index: {}]
  %s1 = inlined_call_operand.vmem [shape: f32[96,64], index: 1, kind: input, shape index: {}]
  %s2 = inlined_call_operand.vmem [shape: f32[64,128], index: 2, kind: input, shape index: {}]
  %s3 = inlined_call_operand.hbm [shape: f32[96,128], index: 3, kind: output, shape index: {0}]
  %s4 = inlined_call_operand.hbm [shape: f32[24,128], index: 4, kind: output, shape index: {1}]
  %s5 = inlined_call_operand.hbm [shape: f32[24,128], index: 5, kind: output, shape index: {2}]
  %6 = xla_tuple %s3, %s4, %s5
  %s7 = sld [smem:[#allocation0]]
  $region61: #{tpu_custom_call.1} parent=0
    _
  %s9 = ssub.s32 1, %s7
  %s10 = scalar_select 0, %s9, %s7
  %11 = sst [smem:[#allocation2]] %s0
  $region1: #{tpu_custom_call.1} parent=0
    #allocation3 [shape = 'u8[32768]{0}', space=vmem, size = 0x8000, scoped, tag = 'output window, operand 0']
    #allocation4 [shape = 's32[2]{0}', space=sflag, size = 0x8, scoped, tag = 'scoped memory for tpu_custom_call.1']
    #allocation5 [shape = 'u8[8192]{0}', space=vmem, size = 0x2000, scoped, tag = 'output window, operand 1']
    #allocation6 [shape = 's32[2]{0}', space=sflag, size = 0x8, scoped, tag = 'scoped memory for tpu_custom_call.1']
    #allocation7 [shape = 'u8[8192]{0}', space=vmem, size = 0x2000, scoped, tag = 'output window, operand 2']
    %12 = vsyncpa [#allocation4], 0
    %s13 = scalar_lea.sflag [#allocation4], 1
    %14 = vsyncpa %s13, 0
    %15 = vsyncpa [#allocation6], 0
    %s16 = scalar_lea.sflag [#allocation6], 1
    %17 = vsyncpa %s16, 0
    loop: start=0, step=1, limit=5
    $region2: #{tpu_custom_call.1} parent=1 // loop_pre_header
      _
    $region3: #{tpu_custom_call.1} parent=1 // loop_header
      %s19 = sphi 0, %s23
      %p20 = scmp.ge.s32.totalorder %s19, 5
      %s27 = sphi 0, %s27
      %s29 = sphi 0, %s27
      %s30 = sphi 0, %s29
      %s44 = sphi 0, %s30
      %s50 = sphi 0, %s52
      %s53 = sphi 0, %s50
      %s54 = sphi 0, %s53
      %s70 = sphi 0, %s54
      %s74 = sphi 0, %s74
      %s76 = sphi 0, %s74
      %s77 = sphi 0, %s76
      %s91 = sphi 0, %s77
      %s97 = sphi 0, %s99
      %s100 = sphi 0, %s97
      %s101 = sphi 0, %s100
      %s117 = sphi 0, %s101
      %s123 = sphi 0, %s125
      %s126 = sphi 0, %s123
      %s127 = sphi 0, %s126
      %s143 = sphi 0, %s127
      %s149 = sphi 0, %s151
      %s152 = sphi 0, %s149
      %s153 = sphi 0, %s152
      %s169 = sphi 0, %s153
    $region4: #{tpu_custom_call.1} parent=1 // loop_header_branch
      %22 = sbr.rel (%p20) target = $region8
    $region5: #{tpu_custom_call.1} parent=1 // loop_body
      %s24 = ssub.s32 %s19, 1
      %s25 = ssub.s32 %s19, 2
      %s26 = sadd.s32 %s19, 1
      %s28 = sadd.s32 %s27, 1
      %p31 = scmp.eq.s32.totalorder %s19, 2
      %p32 = scmp.ne.s32.totalorder %s27, %s29
      %p33 = scmp.eq.s32.totalorder %s19, 0
      %p34 = por %p32, %p33
      %p35 = scmp.ne.s32.totalorder %s27, %s29
      %p36 = scmp.eq.s32.totalorder %s24, 2
      %p37 = por %p35, %p36
      %p38 = scmp.ne.s32.totalorder %s29, %s30
      %p39 = scmp.eq.s32.totalorder %s24, 0
      %p40 = por %p38, %p39
      %p41 = scmp.ne.s32.totalorder %s29, %s30
      %p42 = scmp.eq.s32.totalorder %s25, 2
      %p43 = por %p41, %p42
      %p45 = scmp.ne.s32.totalorder %s30, %s44
      %p46 = scmp.eq.s32.totalorder %s25, 0
      %p47 = por %p45, %p46
      %s48 = ssub.s32 %s19, %s26
      %p49 = scmp.eq.s32.totalorder %s48, 0
      %s51 = sadd.s32 %s50, 1
      %s52 = scalar_select %p49, %s50, %s51
      %p55 = pneg %p49
      %p56 = scmp.eq.s32.totalorder %s19, 2
      %p57 = por %p55, %p56
      %p58 = scmp.ne.s32.totalorder %s50, %s53
      %p59 = scmp.eq.s32.totalorder %s19, 0
      %p60 = por %p58, %p59
      %p61 = scmp.ne.s32.totalorder %s50, %s53
      %p62 = scmp.eq.s32.totalorder %s24, 2
      %p63 = por %p61, %p62
      %p64 = scmp.ne.s32.totalorder %s53, %s54
      %p65 = scmp.eq.s32.totalorder %s24, 0
      %p66 = por %p64, %p65
      %p67 = scmp.ne.s32.totalorder %s53, %s54
      %p68 = scmp.eq.s32.totalorder %s25, 2
      %p69 = por %p67, %p68
      %p71 = scmp.ne.s32.totalorder %s54, %s70
      %p72 = scmp.eq.s32.totalorder %s25, 0
      %p73 = por %p71, %p72
      %s75 = sadd.s32 %s74, 1
      %p78 = scmp.eq.s32.totalorder %s19, 2
      %p79 = scmp.ne.s32.totalorder %s74, %s76
      %p80 = scmp.eq.s32.totalorder %s19, 0
      %p81 = por %p79, %p80
      %p82 = scmp.ne.s32.totalorder %s74, %s76
      %p83 = scmp.eq.s32.totalorder %s24, 2
      %p84 = por %p82, %p83
      %p85 = scmp.ne.s32.totalorder %s76, %s77
      %p86 = scmp.eq.s32.totalorder %s24, 0
      %p87 = por %p85, %p86
      %p88 = scmp.ne.s32.totalorder %s76, %s77
      %p89 = scmp.eq.s32.totalorder %s25, 2
      %p90 = por %p88, %p89
      %p92 = scmp.ne.s32.totalorder %s77, %s91
      %p93 = scmp.eq.s32.totalorder %s25, 0
      %p94 = por %p92, %p93
      %s95 = ssub.s32 %s19, %s26
      %p96 = scmp.eq.s32.totalorder %s95, 0
      %s98 = sadd.s32 %s97, 1
      %s99 = scalar_select %p96, %s97, %s98
      %p102 = pneg %p96
      %p103 = scmp.eq.s32.totalorder %s19, 2
      %p104 = por %p102, %p103
      %p105 = scmp.ne.s32.totalorder %s97, %s100
      %p106 = scmp.eq.s32.totalorder %s19, 0
      %p107 = por %p105, %p106
      %p108 = scmp.ne.s32.totalorder %s97, %s100
      %p109 = scmp.eq.s32.totalorder %s24, 2
      %p110 = por %p108, %p109
      %p111 = scmp.ne.s32.totalorder %s100, %s101
      %p112 = scmp.eq.s32.totalorder %s24, 0
      %p113 = por %p111, %p112
      %p114 = scmp.ne.s32.totalorder %s100, %s101
      %p115 = scmp.eq.s32.totalorder %s25, 2
      %p116 = por %p114, %p115
      %p118 = scmp.ne.s32.totalorder %s101, %s117
      %p119 = scmp.eq.s32.totalorder %s25, 0
      %p120 = por %p118, %p119
      %s121 = ssub.s32 %s19, %s26
      %p122 = scmp.eq.s32.totalorder %s121, 0
      %s124 = sadd.s32 %s123, 1
      %s125 = scalar_select %p122, %s123, %s124
      %p128 = pneg %p122
      %p129 = scmp.eq.s32.totalorder %s19, 2
      %p130 = por %p128, %p129
      %p131 = scmp.ne.s32.totalorder %s123, %s126
      %p132 = scmp.eq.s32.totalorder %s19, 0
      %p133 = por %p131, %p132
      %p134 = scmp.ne.s32.totalorder %s123, %s126
      %p135 = scmp.eq.s32.totalorder %s24, 2
      %p136 = por %p134, %p135
      %p137 = scmp.ne.s32.totalorder %s126, %s127
      %p138 = scmp.eq.s32.totalorder %s24, 0
      %p139 = por %p137, %p138
      %p140 = scmp.ne.s32.totalorder %s126, %s127
      %p141 = scmp.eq.s32.totalorder %s25, 2
      %p142 = por %p140, %p141
      %p144 = scmp.ne.s32.totalorder %s127, %s143
      %p145 = scmp.eq.s32.totalorder %s25, 0
      %p146 = por %p144, %p145
      %s147 = ssub.s32 %s19, %s26
      %p148 = scmp.eq.s32.totalorder %s147, 0
      %s150 = sadd.s32 %s149, 1
      %s151 = scalar_select %p148, %s149, %s150
      %p154 = pneg %p148
      %p155 = scmp.eq.s32.totalorder %s19, 2
      %p156 = por %p154, %p155
      %p157 = scmp.ne.s32.totalorder %s149, %s152
      %p158 = scmp.eq.s32.totalorder %s19, 0
      %p159 = por %p157, %p158
      %p160 = scmp.ne.s32.totalorder %s149, %s152
      %p161 = scmp.eq.s32.totalorder %s24, 2
      %p162 = por %p160, %p161
      %p163 = scmp.ne.s32.totalorder %s152, %s153
      %p164 = scmp.eq.s32.totalorder %s24, 0
      %p165 = por %p163, %p164
      %p166 = scmp.ne.s32.totalorder %s152, %s153
      %p167 = scmp.eq.s32.totalorder %s25, 2
      %p168 = por %p166, %p167
      %p170 = scmp.ne.s32.totalorder %s153, %s169
      %p171 = scmp.eq.s32.totalorder %s25, 0
      %p172 = por %p170, %p171
      %p173 = scmp.le.s32.totalorder 1, %s19
      %p174 = scmp.lt.s32.totalorder %s19, 4
      %p175 = pnand %p173, %p174
      %p176 = pneg %p175
      // Predicated region
      $region9: #{tpu_custom_call.1} parent=5 // pred_check
        _
      $region10: #{tpu_custom_call.1} parent=5 // pred_check_branch
        %178 = sbr.rel (%p175) target = $region12
      $region11: #{tpu_custom_call.1} parent=5 // pred_region
        %s179 = ssub.s32 %s19, 1
        // Predicated region
        $region13: #{tpu_custom_call.1} parent=11 // pred_check
          %p180 = pneg %p40
        $region14: #{tpu_custom_call.1} parent=11 // pred_check_branch
          %182 = sbr.rel (%p180) target = $region16
        $region15: #{tpu_custom_call.1} parent=11 // pred_region
          _
        $region16: #{tpu_custom_call.1} parent=11 // pred_fallthru
          _
        // Predicated region
        $region17: #{tpu_custom_call.1} parent=11 // pred_check
          %p183 = pneg %p87
        $region18: #{tpu_custom_call.1} parent=11 // pred_check_branch
          %185 = sbr.rel (%p183) target = $region20
        $region19: #{tpu_custom_call.1} parent=11 // pred_region
          _
        $region20: #{tpu_custom_call.1} parent=11 // pred_fallthru
          _
      $region12: #{tpu_custom_call.1} parent=5 // pred_fallthru
        _
      %p186 = scmp.lt.s32.totalorder %s19, 3
      // Predicated region
      $region21: #{tpu_custom_call.1} parent=5 // pred_check
        %p187 = pneg %p186
      $region22: #{tpu_custom_call.1} parent=5 // pred_check_branch
        %189 = sbr.rel (%p187) target = $region24
      $region23: #{tpu_custom_call.1} parent=5 // pred_region
        // Predicated region
        $region25: #{tpu_custom_call.1} parent=23 // pred_check
          %p190 = pneg %p60
        $region26: #{tpu_custom_call.1} parent=23 // pred_check_branch
          %192 = sbr.rel (%p190) target = $region28
        $region27: #{tpu_custom_call.1} parent=23 // pred_region
          %s193 = smul.u32 4, %s19
          %p194 = scmp.lt.s32.totalorder %s193, 11
          %s195 = scalar_select %p194, %s193, 11
          %s196 = smul.addr %s195, 8
          %s197 = scalar_lea.vmem %s1, %s196
          %s198 = smul.u32 4, %s19
        $region28: #{tpu_custom_call.1} parent=23 // pred_fallthru
          _
      $region24: #{tpu_custom_call.1} parent=5 // pred_fallthru
        _
      %p199 = scmp.le.s32.totalorder 1, %s19
      %p200 = scmp.lt.s32.totalorder %s19, 4
      %p201 = pnand %p199, %p200
      %p202 = pneg %p201
      // Predicated region
      $region29: #{tpu_custom_call.1} parent=5 // pred_check
        _
      $region30: #{tpu_custom_call.1} parent=5 // pred_check_branch
        %204 = sbr.rel (%p201) target = $region32
      $region31: #{tpu_custom_call.1} parent=5 // pred_region
        %s205 = ssub.s32 %s19, 1
        %p206 = pneg %p40
        %p207 = pneg %p37
        %s208 = smul.u32 4, %s24
        %p209 = scmp.lt.s32.totalorder %s208, 11
        %s210 = scalar_select %p209, %s208, 11
        %s211 = smul.addr %s210, 8
        %s212 = scalar_lea.vmem %s1, %s211
        %p213 = pneg %p66
        %p214 = pneg %p63
        %p215 = pneg %p87
        %p216 = pneg %p84
        %p217 = pneg %p113
        %p218 = pneg %p110
        %s219 = sand.u32 %s100, 1
        %s220 = scalar_lea.sflag [#allocation4], %s219
        %s221 = sand.u32 %s100, 1
        %s222 = smul.addr %s221, 32
        %s223 = scalar_lea.vmem [#allocation3], %s222
        %p224 = pneg %p139
        %p225 = pneg %p136
        %s226 = sand.u32 %s24, 1
        %s227 = scalar_lea.sflag [#allocation6], %s226
        %s228 = sand.u32 %s126, 1
        %s229 = smul.addr %s228, 8
        %s230 = scalar_lea.vmem [#allocation5], %s229
        %p231 = pneg %p165
        %p232 = pneg %p162
        %s233 = sand.u32 %s24, 1
        %s234 = scalar_lea.sflag [#allocation6], %s233
        %s235 = sand.u32 %s152, 1
        %s236 = smul.addr %s235, 8
        %s237 = scalar_lea.vmem [#allocation7], %s236
        %s238 = smul.u32 4, %s24
        %p239 = scmp.lt.s32.totalorder %s238, 11
        %s240 = scalar_select %p239, %s238, 11
        %s241 = smul.addr %s240, 8
        %s242 = scalar_lea.vmem %s1, %s241
        %s243 = smul.u32 4, %s24
        %s244 = smul.u32 4, %s24
        %s245 = sld [smem:[#allocation2]]
        %v246 = vld [vmem:[%s242] sm:$0xff]
        %v247 = vld [vmem:[%s242 + $0x8] sm:$0xff]
        %v248 = vld [vmem:[%s242 + $0x10] sm:$0xff]
        %v249 = vld [vmem:[%s242 + $0x18] sm:$0xff]
        %v250 = vmax.f32 %v246, 1e-10
        %v251 = vmax.f32 %v247, 1e-10
        %v252 = vmax.f32 %v248, 1e-10
        %v253 = vmax.f32 %v249, 1e-10
        %v254 = vlog2.pop %v250
        %v255 = vmul.f32 %v254, 0.6931472
        %v256 = vlog2.pop %v251
        %v257 = vmul.f32 %v256, 0.6931472
        %v258 = vlog2.pop %v252
        %v259 = vmul.f32 %v258, 0.6931472
        %v260 = vlog2.pop %v253
        %v261 = vmul.f32 %v260, 0.6931472
        %v262 = vmul.f32 %v255, 4.3429446
        %v263 = vmul.f32 %v257, 4.3429446
        %v264 = vmul.f32 %v259, 4.3429446
        %v265 = vmul.f32 %v261, 4.3429446
        %v266 = vstv %s245
        %v267 = vsub.f32 %v262, %v266
        %v268 = vsub.f32 %v263, %v266
        %v269 = vsub.f32 %v264, %v266
        %v270 = vsub.f32 %v265, %v266
        %v271 = vmax.f32 %v267, 0.0
        %v272 = vmax.f32 %v268, 0.0
        %v273 = vmax.f32 %v269, 0.0
        %v274 = vmax.f32 %v270, 0.0
        %v275 = vld [vmem:[%s2] sm:$0xff]
        %v276 = vld [vmem:[%s2 + $0x8] sm:$0xff]
        %v277 = vld [vmem:[%s2 + $0x10] sm:$0xff]
        %v278 = vld [vmem:[%s2 + $0x18] sm:$0xff]
        %v279 = vld [vmem:[%s2 + $0x20] sm:$0xff]
        %v280 = vld [vmem:[%s2 + $0x28] sm:$0xff]
        %v281 = vld [vmem:[%s2 + $0x30] sm:$0xff]
        %v282 = vld [vmem:[%s2 + $0x38] sm:$0xff]
        %vm283 = vcmask 523264
        %v285 = vsel %vm283, %v271, 0
        %v288 = vsel %vm283, %v272, 0
        %v291 = vsel %vm283, %v273, 0
        %v294 = vsel %vm283, %v274, 0
        %296 = vmatprep.subr.mxu0 0.0
        %297 = vmatpush1.msra.mxu0 %v275
        %298 = vmatprep.subr.mxu0 0.0
        %299 = vmatpush1.msra.mxu0 %v276
        %300 = vmatprep.subr.mxu0 0.0
        %301 = vmatpush1.msra.mxu0 %v277
        %302 = vmatprep.subr.mxu0 0.0
        %303 = vmatpush1.msra.mxu0 %v278
        %304 = vmatprep.subr.mxu0 0.0
        %305 = vmatpush1.msra.mxu0 %v279
        %306 = vmatprep.subr.mxu0 0.0
        %307 = vmatpush1.msra.mxu0 %v280
        %308 = vmatprep.subr.mxu0 0.0
        %309 = vmatpush1.msra.mxu0 %v281
        %310 = vmatprep.subr.mxu0 0.0
        %311 = vmatpush1.msra.mxu0 %v282
        %312 = vmatprep.subr.mxu0 0.0
        %313 = vmatpush1.msra.mxu0 0.0
        %314 = vmatprep.subr.mxu0 0.0
        %315 = vmatpush1.msra.mxu0 0.0
        %316 = vmatprep.subr.mxu0 0.0
        %317 = vmatpush1.msra.mxu0 0.0
        %318 = vmatprep.subr.mxu0 0.0
        %319 = vmatpush1.msra.mxu0 0.0
        %320 = vmatprep.subr.mxu0 0.0
        %321 = vmatpush1.msra.mxu0 0.0
        %322 = vmatprep.subr.mxu0 0.0
        %323 = vmatpush1.msra.mxu0 0.0
        %324 = vmatprep.subr.mxu0 0.0
        %325 = vmatpush1.msra.mxu0 0.0
        %326 = vmatprep.subr.mxu0 0.0
        %327 = vmatpush1.msra.mxu0 0.0
        %328 = vmatprep.subr.mxu0 0.0
        %329 = vmatpush1.msra.mxu0 0.0
        %330 = vmatprep.subr.mxu0 0.0
        %331 = vmatpush1.msra.mxu0 0.0
        %332 = vmatprep.subr.mxu0 0.0
        %333 = vmatpush1.msra.mxu0 0.0
        %334 = vmatprep.subr.mxu0 0.0
        %335 = vmatpush1.msra.mxu0 0.0
        %336 = vmatprep.subr.mxu0 0.0
        %337 = vmatpush1.msra.mxu0 0.0
        %338 = vmatprep.subr.mxu0 0.0
        %339 = vmatpush1.msra.mxu0 0.0
        %340 = vmatprep.subr.mxu0 0.0
        %341 = vmatpush1.msra.mxu0 0.0
        %342 = vmatprep.subr.mxu0 0.0
        %343 = vmatpush1.msra.mxu0 0.0
        %344 = vmatprep.subr.mxu0 0.0
        %345 = vmatpush1.msra.mxu0 0.0
        %346 = vmatprep.subr.mxu0 0.0
        %347 = vmatpush1.msra.mxu0 0.0
        %348 = vmatprep.subr.mxu0 0.0
        %349 = vmatpush1.msra.mxu0 0.0
        %350 = vmatprep.subr.mxu0 0.0
        %351 = vmatpush1.msra.mxu0 0.0
        %352 = vmatprep.subr.mxu0 0.0
        %353 = vmatpush1.msra.mxu0 0.0
        %354 = vmatprep.subr.mxu0 0.0
        %355 = vmatpush1.msra.mxu0 0.0
        %356 = vmatprep.subr.mxu0 0.0
        %357 = vmatpush1.msra.mxu0 0.0
        %358 = vmatprep.subr.mxu0 0.0
        %359 = vmatpush1.msra.mxu0 0.0
        %360 = vmatprep.mubr.f32.mxu0 0.0
        %361 = vmatmul.mubr.f32.gmra.mrb[0].mxu0 %v285
        %v362 = vpop.f32.mrb[0].mxu0
        %v363 = vadd.f32 0.0, %v362
        %v364 = vpop.f32.mrb[0].mxu0
        %365 = vmatprep.mubr.f32.mxu0 0.0
        %366 = vmatmul.mubr.f32.gmra.mrb[0].mxu0 %v288
        %v367 = vpop.f32.mrb[0].mxu0
        %v368 = vadd.f32 0.0, %v367
        %v369 = vpop.f32.mrb[0].mxu0
        %370 = vmatprep.mubr.f32.mxu0 0.0
        %371 = vmatmul.mubr.f32.gmra.mrb[0].mxu0 %v291
        %v372 = vpop.f32.mrb[0].mxu0
        %v373 = vadd.f32 0.0, %v372
        %v374 = vpop.f32.mrb[0].mxu0
        %375 = vmatprep.mubr.f32.mxu0 0.0
        %376 = vmatmul.mubr.f32.gmra.mrb[0].mxu0 %v294
        %v377 = vpop.f32.mrb[0].mxu0
        %v378 = vadd.f32 0.0, %v377
        %v379 = vpop.f32.mrb[0].mxu0
        %380 = vdwg.mxu0
        %381 = vst [vmem:[%s223] sm:$0xff] %v363
        %382 = vst [vmem:[%s223 + $0x8] sm:$0xff] %v368
        %383 = vst [vmem:[%s223 + $0x10] sm:$0xff] %v373
        %384 = vst [vmem:[%s223 + $0x18] sm:$0xff] %v378
        %v385 = vadd.f32 %v363, %v368
        %v386 = vadd.f32 %v385, %v373
        %v387 = vadd.f32 %v386, %v378
        %388 = vadd.xlane.f32.xlu0 %v387
        %v389 = vpop.xlane.xlu0 %388
        %v390 = vrot.slane %v389, 4
        %v391 = vadd.f32 %v389, %v390
        %v392 = vrot.slane %v391, 2
        %v393 = vadd.f32 %v391, %v392
        %v394 = vrot.slane %v393, 1
        %v395 = vadd.f32 %v393, %v394
        %s396 = vtos %v395
        %v397 = vmul.f32 %v363, %v363
        %v398 = vmul.f32 %v368, %v368
        %v399 = vmul.f32 %v373, %v373
        %v400 = vmul.f32 %v378, %v378
        %v401 = vadd.f32 %v397, %v398
        %v402 = vadd.f32 %v401, %v399
        %v403 = vadd.f32 %v402, %v400
        %404 = vadd.xlane.f32.xlu0 %v403
        %v405 = vpop.xlane.xlu0 %404
        %v406 = vrot.slane %v405, 4
        %v407 = vadd.f32 %v405, %v406
        %v408 = vrot.slane %v407, 2
        %v409 = vadd.f32 %v407, %v408
        %v410 = vrot.slane %v409, 1
        %v411 = vadd.f32 %v409, %v410
        %s412 = vtos %v411
        %v413 = vstv %s396
        %414 = vst [vmem:[%s230] sm:$0xff] %v413
        %v415 = vstv %s412
        %416 = vst [vmem:[%s237] sm:$0xff] %v415
        %s417 = sand.u32 %s100, 1
        %s418 = scalar_lea.sflag [#allocation4], %s417
        %s419 = sand.u32 %s100, 1
        %s420 = smul.addr %s419, 32
        %s421 = scalar_lea.vmem [#allocation3], %s420
        %s422 = sand.u32 %s24, 1
        %s423 = scalar_lea.sflag [#allocation6], %s422
        %s424 = sand.u32 %s126, 1
        %s425 = smul.addr %s424, 8
        %s426 = scalar_lea.vmem [#allocation5], %s425
        %s427 = sand.u32 %s24, 1
        %s428 = scalar_lea.sflag [#allocation6], %s427
        %s429 = sand.u32 %s152, 1
        %s430 = smul.addr %s429, 8
        %s431 = scalar_lea.vmem [#allocation7], %s430
        // Predicated region
        $region33: #{tpu_custom_call.1} parent=31 // pred_check
          %p432 = pneg %p110
        $region34: #{tpu_custom_call.1} parent=31 // pred_check_branch
          %434 = sbr.rel (%p432) target = $region36
        $region35: #{tpu_custom_call.1} parent=31 // pred_region
          %s435 = smul.u32 4, %s24
          %s437 = ssub.s32 512, 512
          %438 = vsyncadd %s418, %s437
          %s439 = smul.addr %s435, 128
          %s440 = scalar_lea.hbm %s3, %s439
          %s441 = sshll.u32 %s421, 4
          %s442 = int_to_ptr.vmem [resolvable:$true] %s441
          %447 = dma.vmem_to_hbm [thread:$0]  %s442, 512, %s440, %s418, 128, 128, 8
        $region36: #{tpu_custom_call.1} parent=31 // pred_fallthru
          _
        // Predicated region
        $region37: #{tpu_custom_call.1} parent=31 // pred_check
          %p448 = pneg %p136
        $region38: #{tpu_custom_call.1} parent=31 // pred_check_branch
          %450 = sbr.rel (%p448) target = $region40
        $region39: #{tpu_custom_call.1} parent=31 // pred_region
          %s452 = ssub.s32 128, 128
          %453 = vsyncadd %s423, %s452
          %s454 = smul.addr %s24, 128
          %s455 = scalar_lea.hbm %s4, %s454
          %s457 = sshll.u32 %s426, 4
          %s458 = int_to_ptr.vmem [resolvable:$true] %s457
          %460 = dma.vmem_to_hbm [thread:$0]  %s458, 128, %s455, %s423
        $region40: #{tpu_custom_call.1} parent=31 // pred_fallthru
          _
        // Predicated region
        $region41: #{tpu_custom_call.1} parent=31 // pred_check
          %p461 = pneg %p162
        $region42: #{tpu_custom_call.1} parent=31 // pred_check_branch
          %463 = sbr.rel (%p461) target = $region44
        $region43: #{tpu_custom_call.1} parent=31 // pred_region
          %s465 = ssub.s32 128, 128
          %466 = vsyncadd %s428, %s465
          %s467 = smul.addr %s24, 128
          %s468 = scalar_lea.hbm %s5, %s467
          %s470 = sshll.u32 %s431, 4
          %s471 = int_to_ptr.vmem [resolvable:$true] %s470
          %473 = dma.vmem_to_hbm [thread:$0]  %s471, 128, %s468, %s428
        $region44: #{tpu_custom_call.1} parent=31 // pred_fallthru
          _
      $region32: #{tpu_custom_call.1} parent=5 // pred_fallthru
        _
      %p474 = scmp.le.s32.totalorder 2, %s19
      // Predicated region
      $region45: #{tpu_custom_call.1} parent=5 // pred_check
        %p475 = pneg %p474
      $region46: #{tpu_custom_call.1} parent=5 // pred_check_branch
        %477 = sbr.rel (%p475) target = $region48
      $region47: #{tpu_custom_call.1} parent=5 // pred_region
        %s478 = ssub.s32 %s19, 2
        // Predicated region
        $region49: #{tpu_custom_call.1} parent=47 // pred_check
          %p479 = pneg %p116
        $region50: #{tpu_custom_call.1} parent=47 // pred_check_branch
          %481 = sbr.rel (%p479) target = $region52
        $region51: #{tpu_custom_call.1} parent=47 // pred_region
          %s482 = sand.u32 %s101, 1
          %s483 = scalar_lea.sflag [#allocation4], %s482
          %s484 = sand.u32 %s101, 1
          %s485 = smul.addr %s484, 32
          %s486 = scalar_lea.vmem [#allocation3], %s485
          %487 = dma.done %s483, 512
        $region52: #{tpu_custom_call.1} parent=47 // pred_fallthru
          _
        // Predicated region
        $region53: #{tpu_custom_call.1} parent=47 // pred_check
          %p488 = pneg %p142
        $region54: #{tpu_custom_call.1} parent=47 // pred_check_branch
          %490 = sbr.rel (%p488) target = $region56
        $region55: #{tpu_custom_call.1} parent=47 // pred_region
          %s491 = sand.u32 %s25, 1
          %s492 = scalar_lea.sflag [#allocation6], %s491
          %s493 = sand.u32 %s127, 1
          %s494 = smul.addr %s493, 8
          %s495 = scalar_lea.vmem [#allocation5], %s494
          %496 = dma.done %s492, 128
        $region56: #{tpu_custom_call.1} parent=47 // pred_fallthru
          _
        // Predicated region
        $region57: #{tpu_custom_call.1} parent=47 // pred_check
          %p497 = pneg %p168
        $region58: #{tpu_custom_call.1} parent=47 // pred_check_branch
          %499 = sbr.rel (%p497) target = $region60
        $region59: #{tpu_custom_call.1} parent=47 // pred_region
          %s500 = sand.u32 %s25, 1
          %s501 = scalar_lea.sflag [#allocation6], %s500
          %s502 = sand.u32 %s153, 1
          %s503 = smul.addr %s502, 8
          %s504 = scalar_lea.vmem [#allocation7], %s503
          %505 = dma.done %s501, 128
        $region60: #{tpu_custom_call.1} parent=47 // pred_fallthru
          _
      $region48: #{tpu_custom_call.1} parent=5 // pred_fallthru
        _
    $region6: #{tpu_custom_call.1} parent=1 // loop_footer
      %s23 = sadd.s32 1, %s19
    $region7: #{tpu_custom_call.1} parent=1 // loop_footer_branch
      %18 = sbr.rel target = $region3
    $region8: #{tpu_custom_call.1} parent=1 // loop_exit
      _
    %506 = vsyncpa [#allocation4], 1
    %s507 = scalar_lea.sflag [#allocation4], 1
    %508 = vsyncpa %s507, 1
    %509 = vsyncpa [#allocation6], 1
    %s510 = scalar_lea.sflag [#allocation6], 1
    %511 = vsyncpa %s510, 1

// kernel: tpu_custom_call.1
$region0: #{tpu_custom_call.1}
  #allocation0 [shape = 'u32[]', space=smem, size = 0x4, offset = 0x4, fixed_abs, tag = 'smem constant byte address 0x4 - core index']
  #allocation1 [shape = 'u32[144,128]{1,0:T(1,128)}', space=vmem, size = 0x12000, scoped, tag = 'internal scratch']
  #allocation2 [shape = 'f32[1]{0:T(128)S(6)}', space=smem, size = 0x200, scoped, tag = 'scoped memory for tpu_custom_call.1']
  %s0 = inlined_call_operand.<no memory space> [shape: f32[1], index: 0, kind: input, shape index: {}]
  %s1 = inlined_call_operand.vmem [shape: f32[96,64], index: 1, kind: input, shape index: {}]
  %s2 = inlined_call_operand.vmem [shape: f32[64,128], index: 2, kind: input, shape index: {}]
  %s3 = inlined_call_operand.hbm [shape: f32[96,128], index: 3, kind: output, shape index: {0}]
  %s4 = inlined_call_operand.hbm [shape: f32[24,128], index: 4, kind: output, shape index: {1}]
  %s5 = inlined_call_operand.hbm [shape: f32[24,128], index: 5, kind: output, shape index: {2}]
  %6 = xla_tuple %s3, %s4, %s5
  %s7 = sld [smem:[#allocation0]]
  $region61: #{tpu_custom_call.1} parent=0
    _
  %s9 = ssub.s32 1, %s7
  %s10 = scalar_select 0, %s9, %s7
  %11 = sst [smem:[#allocation2]] %s0
  $region1: #{tpu_custom_call.1} parent=0
    #allocation3 [shape = 'u8[32768]{0}', space=vmem, size = 0x8000, scoped, tag = 'output window, operand 0']
    #allocation4 [shape = 's32[2]{0}', space=sflag, size = 0x8, scoped, tag = 'scoped memory for tpu_custom_call.1']
    #allocation5 [shape = 'u8[8192]{0}', space=vmem, size = 0x2000, scoped, tag = 'output window, operand 1']
    #allocation6 [shape = 's32[2]{0}', space=sflag, size = 0x8, scoped, tag = 'scoped memory for tpu_custom_call.1']
    #allocation7 [shape = 'u8[8192]{0}', space=vmem, size = 0x2000, scoped, tag = 'output window, operand 2']
    %12 = vsyncpa [#allocation4], 0
    %s13 = scalar_lea.sflag [#allocation4], 1
    %14 = vsyncpa %s13, 0
    %15 = vsyncpa [#allocation6], 0
    %s16 = scalar_lea.sflag [#allocation6], 1
    %17 = vsyncpa %s16, 0
    loop: start=0, step=1, limit=5
    $region2: #{tpu_custom_call.1} parent=1 // loop_pre_header
      _
    $region3: #{tpu_custom_call.1} parent=1 // loop_header
      %s19 = sphi 0, %s23
      %p20 = scmp.ge.s32.totalorder %s19, 5
      %s27 = sphi 0, %s27
      %s29 = sphi 0, %s27
      %s30 = sphi 0, %s29
      %s44 = sphi 0, %s30
      %s50 = sphi 0, %s52
      %s53 = sphi 0, %s50
      %s54 = sphi 0, %s53
      %s70 = sphi 0, %s54
      %s74 = sphi 0, %s74
      %s76 = sphi 0, %s74
      %s77 = sphi 0, %s76
      %s91 = sphi 0, %s77
      %s97 = sphi 0, %s99
      %s100 = sphi 0, %s97
      %s101 = sphi 0, %s100
      %s117 = sphi 0, %s101
      %s123 = sphi 0, %s125
      %s126 = sphi 0, %s123
      %s127 = sphi 0, %s126
      %s143 = sphi 0, %s127
      %s149 = sphi 0, %s151
      %s152 = sphi 0, %s149
      %s153 = sphi 0, %s152
      %s169 = sphi 0, %s153
    $region4: #{tpu_custom_call.1} parent=1 // loop_header_branch
      %22 = sbr.rel (%p20) target = $region8
    $region5: #{tpu_custom_call.1} parent=1 // loop_body
      %s24 = ssub.s32 %s19, 1
      %s25 = ssub.s32 %s19, 2
      %s26 = sadd.s32 %s19, 1
      %s28 = sadd.s32 %s27, 1
      %p31 = scmp.eq.s32.totalorder %s19, 2
      %p32 = scmp.ne.s32.totalorder %s27, %s29
      %p33 = scmp.eq.s32.totalorder %s19, 0
      %p34 = por %p32, %p33
      %p35 = scmp.ne.s32.totalorder %s27, %s29
      %p36 = scmp.eq.s32.totalorder %s24, 2
      %p37 = por %p35, %p36
      %p38 = scmp.ne.s32.totalorder %s29, %s30
      %p39 = scmp.eq.s32.totalorder %s24, 0
      %p40 = por %p38, %p39
      %p41 = scmp.ne.s32.totalorder %s29, %s30
      %p42 = scmp.eq.s32.totalorder %s25, 2
      %p43 = por %p41, %p42
      %p45 = scmp.ne.s32.totalorder %s30, %s44
      %p46 = scmp.eq.s32.totalorder %s25, 0
      %p47 = por %p45, %p46
      %s48 = ssub.s32 %s19, %s26
      %p49 = scmp.eq.s32.totalorder %s48, 0
      %s51 = sadd.s32 %s50, 1
      %s52 = scalar_select %p49, %s50, %s51
      %p55 = pneg %p49
      %p56 = scmp.eq.s32.totalorder %s19, 2
      %p57 = por %p55, %p56
      %p58 = scmp.ne.s32.totalorder %s50, %s53
      %p59 = scmp.eq.s32.totalorder %s19, 0
      %p60 = por %p58, %p59
      %p61 = scmp.ne.s32.totalorder %s50, %s53
      %p62 = scmp.eq.s32.totalorder %s24, 2
      %p63 = por %p61, %p62
      %p64 = scmp.ne.s32.totalorder %s53, %s54
      %p65 = scmp.eq.s32.totalorder %s24, 0
      %p66 = por %p64, %p65
      %p67 = scmp.ne.s32.totalorder %s53, %s54
      %p68 = scmp.eq.s32.totalorder %s25, 2
      %p69 = por %p67, %p68
      %p71 = scmp.ne.s32.totalorder %s54, %s70
      %p72 = scmp.eq.s32.totalorder %s25, 0
      %p73 = por %p71, %p72
      %s75 = sadd.s32 %s74, 1
      %p78 = scmp.eq.s32.totalorder %s19, 2
      %p79 = scmp.ne.s32.totalorder %s74, %s76
      %p80 = scmp.eq.s32.totalorder %s19, 0
      %p81 = por %p79, %p80
      %p82 = scmp.ne.s32.totalorder %s74, %s76
      %p83 = scmp.eq.s32.totalorder %s24, 2
      %p84 = por %p82, %p83
      %p85 = scmp.ne.s32.totalorder %s76, %s77
      %p86 = scmp.eq.s32.totalorder %s24, 0
      %p87 = por %p85, %p86
      %p88 = scmp.ne.s32.totalorder %s76, %s77
      %p89 = scmp.eq.s32.totalorder %s25, 2
      %p90 = por %p88, %p89
      %p92 = scmp.ne.s32.totalorder %s77, %s91
      %p93 = scmp.eq.s32.totalorder %s25, 0
      %p94 = por %p92, %p93
      %s95 = ssub.s32 %s19, %s26
      %p96 = scmp.eq.s32.totalorder %s95, 0
      %s98 = sadd.s32 %s97, 1
      %s99 = scalar_select %p96, %s97, %s98
      %p102 = pneg %p96
      %p103 = scmp.eq.s32.totalorder %s19, 2
      %p104 = por %p102, %p103
      %p105 = scmp.ne.s32.totalorder %s97, %s100
      %p106 = scmp.eq.s32.totalorder %s19, 0
      %p107 = por %p105, %p106
      %p108 = scmp.ne.s32.totalorder %s97, %s100
      %p109 = scmp.eq.s32.totalorder %s24, 2
      %p110 = por %p108, %p109
      %p111 = scmp.ne.s32.totalorder %s100, %s101
      %p112 = scmp.eq.s32.totalorder %s24, 0
      %p113 = por %p111, %p112
      %p114 = scmp.ne.s32.totalorder %s100, %s101
      %p115 = scmp.eq.s32.totalorder %s25, 2
      %p116 = por %p114, %p115
      %p118 = scmp.ne.s32.totalorder %s101, %s117
      %p119 = scmp.eq.s32.totalorder %s25, 0
      %p120 = por %p118, %p119
      %s121 = ssub.s32 %s19, %s26
      %p122 = scmp.eq.s32.totalorder %s121, 0
      %s124 = sadd.s32 %s123, 1
      %s125 = scalar_select %p122, %s123, %s124
      %p128 = pneg %p122
      %p129 = scmp.eq.s32.totalorder %s19, 2
      %p130 = por %p128, %p129
      %p131 = scmp.ne.s32.totalorder %s123, %s126
      %p132 = scmp.eq.s32.totalorder %s19, 0
      %p133 = por %p131, %p132
      %p134 = scmp.ne.s32.totalorder %s123, %s126
      %p135 = scmp.eq.s32.totalorder %s24, 2
      %p136 = por %p134, %p135
      %p137 = scmp.ne.s32.totalorder %s126, %s127
      %p138 = scmp.eq.s32.totalorder %s24, 0
      %p139 = por %p137, %p138
      %p140 = scmp.ne.s32.totalorder %s126, %s127
      %p141 = scmp.eq.s32.totalorder %s25, 2
      %p142 = por %p140, %p141
      %p144 = scmp.ne.s32.totalorder %s127, %s143
      %p145 = scmp.eq.s32.totalorder %s25, 0
      %p146 = por %p144, %p145
      %s147 = ssub.s32 %s19, %s26
      %p148 = scmp.eq.s32.totalorder %s147, 0
      %s150 = sadd.s32 %s149, 1
      %s151 = scalar_select %p148, %s149, %s150
      %p154 = pneg %p148
      %p155 = scmp.eq.s32.totalorder %s19, 2
      %p156 = por %p154, %p155
      %p157 = scmp.ne.s32.totalorder %s149, %s152
      %p158 = scmp.eq.s32.totalorder %s19, 0
      %p159 = por %p157, %p158
      %p160 = scmp.ne.s32.totalorder %s149, %s152
      %p161 = scmp.eq.s32.totalorder %s24, 2
      %p162 = por %p160, %p161
      %p163 = scmp.ne.s32.totalorder %s152, %s153
      %p164 = scmp.eq.s32.totalorder %s24, 0
      %p165 = por %p163, %p164
      %p166 = scmp.ne.s32.totalorder %s152, %s153
      %p167 = scmp.eq.s32.totalorder %s25, 2
      %p168 = por %p166, %p167
      %p170 = scmp.ne.s32.totalorder %s153, %s169
      %p171 = scmp.eq.s32.totalorder %s25, 0
      %p172 = por %p170, %p171
      %p173 = scmp.le.s32.totalorder 1, %s19
      %p174 = scmp.lt.s32.totalorder %s19, 4
      %p175 = pnand %p173, %p174
      %p176 = pneg %p175
      // Predicated region
      $region9: #{tpu_custom_call.1} parent=5 // pred_check
        _
      $region10: #{tpu_custom_call.1} parent=5 // pred_check_branch
        %178 = sbr.rel (%p175) target = $region12
      $region11: #{tpu_custom_call.1} parent=5 // pred_region
        %s179 = ssub.s32 %s19, 1
        // Predicated region
        $region13: #{tpu_custom_call.1} parent=11 // pred_check
          %p180 = pneg %p40
        $region14: #{tpu_custom_call.1} parent=11 // pred_check_branch
          %182 = sbr.rel (%p180) target = $region16
        $region15: #{tpu_custom_call.1} parent=11 // pred_region
          _
        $region16: #{tpu_custom_call.1} parent=11 // pred_fallthru
          _
        // Predicated region
        $region17: #{tpu_custom_call.1} parent=11 // pred_check
          %p183 = pneg %p87
        $region18: #{tpu_custom_call.1} parent=11 // pred_check_branch
          %185 = sbr.rel (%p183) target = $region20
        $region19: #{tpu_custom_call.1} parent=11 // pred_region
          _
        $region20: #{tpu_custom_call.1} parent=11 // pred_fallthru
          _
      $region12: #{tpu_custom_call.1} parent=5 // pred_fallthru
        _
      %p186 = scmp.lt.s32.totalorder %s19, 3
      // Predicated region
      $region21: #{tpu_custom_call.1} parent=5 // pred_check
        %p187 = pneg %p186
      $region22: #{tpu_custom_call.1} parent=5 // pred_check_branch
        %189 = sbr.rel (%p187) target = $region24
      $region23: #{tpu_custom_call.1} parent=5 // pred_region
        // Predicated region
        $region25: #{tpu_custom_call.1} parent=23 // pred_check
          %p190 = pneg %p60
        $region26: #{tpu_custom_call.1} parent=23 // pred_check_branch
          %192 = sbr.rel (%p190) target = $region28
        $region27: #{tpu_custom_call.1} parent=23 // pred_region
          %s193 = smul.u32 4, %s19
          %p194 = scmp.lt.s32.totalorder %s193, 11
          %s195 = scalar_select %p194, %s193, 11
          %s196 = smul.addr %s195, 8
          %s197 = scalar_lea.vmem %s1, %s196
          %s198 = smul.u32 4, %s19
        $region28: #{tpu_custom_call.1} parent=23 // pred_fallthru
          _
      $region24: #{tpu_custom_call.1} parent=5 // pred_fallthru
        _
      %p199 = scmp.le.s32.totalorder 1, %s19
      %p200 = scmp.lt.s32.totalorder %s19, 4
      %p201 = pnand %p199, %p200
      %p202 = pneg %p201
      // Predicated region
      $region29: #{tpu_custom_call.1} parent=5 // pred_check
        _
      $region30: #{tpu_custom_call.1} parent=5 // pred_check_branch
        %204 = sbr.rel (%p201) target = $region32
      $region31: #{tpu_custom_call.1} parent=5 // pred_region
        %s205 = ssub.s32 %s19, 1
        %p206 = pneg %p40
        %p207 = pneg %p37
        %s208 = smul.u32 4, %s24
        %p209 = scmp.lt.s32.totalorder %s208, 11
        %s210 = scalar_select %p209, %s208, 11
        %s211 = smul.addr %s210, 8
        %s212 = scalar_lea.vmem %s1, %s211
        %p213 = pneg %p66
        %p214 = pneg %p63
        %p215 = pneg %p87
        %p216 = pneg %p84
        %p217 = pneg %p113
        %p218 = pneg %p110
        %s219 = sand.u32 %s100, 1
        %s220 = scalar_lea.sflag [#allocation4], %s219
        %s221 = sand.u32 %s100, 1
        %s222 = smul.addr %s221, 32
        %s223 = scalar_lea.vmem [#allocation3], %s222
        %p224 = pneg %p139
        %p225 = pneg %p136
        %s226 = sand.u32 %s24, 1
        %s227 = scalar_lea.sflag [#allocation6], %s226
        %s228 = sand.u32 %s126, 1
        %s229 = smul.addr %s228, 8
        %s230 = scalar_lea.vmem [#allocation5], %s229
        %p231 = pneg %p165
        %p232 = pneg %p162
        %s233 = sand.u32 %s24, 1
        %s234 = scalar_lea.sflag [#allocation6], %s233
        %s235 = sand.u32 %s152, 1
        %s236 = smul.addr %s235, 8
        %s237 = scalar_lea.vmem [#allocation7], %s236
        %s238 = smul.u32 4, %s24
        %p239 = scmp.lt.s32.totalorder %s238, 11
        %s240 = scalar_select %p239, %s238, 11
        %s241 = smul.addr %s240, 8
        %s242 = scalar_lea.vmem %s1, %s241
        %s243 = smul.u32 4, %s24
        %s244 = smul.u32 4, %s24
        %s245 = sld [smem:[#allocation2]]
        %v246 = vld [vmem:[%s242] sm:$0xff]
        %v247 = vld [vmem:[%s242 + $0x8] sm:$0xff]
        %v248 = vld [vmem:[%s242 + $0x10] sm:$0xff]
        %v249 = vld [vmem:[%s242 + $0x18] sm:$0xff]
        %v250 = vmax.f32 %v246, 1e-10
        %v251 = vmax.f32 %v247, 1e-10
        %v252 = vmax.f32 %v248, 1e-10
        %v253 = vmax.f32 %v249, 1e-10
        %v254 = vlog2.pop %v250
        %v255 = vmul.f32 %v254, 0.6931472
        %v256 = vlog2.pop %v251
        %v257 = vmul.f32 %v256, 0.6931472
        %v258 = vlog2.pop %v252
        %v259 = vmul.f32 %v258, 0.6931472
        %v260 = vlog2.pop %v253
        %v261 = vmul.f32 %v260, 0.6931472
        %v262 = vmul.f32 %v255, 4.3429446
        %v263 = vmul.f32 %v257, 4.3429446
        %v264 = vmul.f32 %v259, 4.3429446
        %v265 = vmul.f32 %v261, 4.3429446
        %v266 = vstv %s245
        %v267 = vsub.f32 %v262, %v266
        %v268 = vsub.f32 %v263, %v266
        %v269 = vsub.f32 %v264, %v266
        %v270 = vsub.f32 %v265, %v266
        %v271 = vmax.f32 %v267, 0.0
        %v272 = vmax.f32 %v268, 0.0
        %v273 = vmax.f32 %v269, 0.0
        %v274 = vmax.f32 %v270, 0.0
        %v275 = vld [vmem:[%s2] sm:$0xff]
        %v276 = vld [vmem:[%s2 + $0x8] sm:$0xff]
        %v277 = vld [vmem:[%s2 + $0x10] sm:$0xff]
        %v278 = vld [vmem:[%s2 + $0x18] sm:$0xff]
        %v279 = vld [vmem:[%s2 + $0x20] sm:$0xff]
        %v280 = vld [vmem:[%s2 + $0x28] sm:$0xff]
        %v281 = vld [vmem:[%s2 + $0x30] sm:$0xff]
        %v282 = vld [vmem:[%s2 + $0x38] sm:$0xff]
        %vm283 = vcmask 523264
        %v285 = vsel %vm283, %v271, 0
        %v288 = vsel %vm283, %v272, 0
        %v291 = vsel %vm283, %v273, 0
        %v294 = vsel %vm283, %v274, 0
        %296 = vmatprep.subr.mxu0 0.0
        %297 = vmatpush1.msra.mxu0 %v275
        %298 = vmatprep.subr.mxu0 0.0
        %299 = vmatpush1.msra.mxu0 %v276
        %300 = vmatprep.subr.mxu0 0.0
        %301 = vmatpush1.msra.mxu0 %v277
        %302 = vmatprep.subr.mxu0 0.0
        %303 = vmatpush1.msra.mxu0 %v278
        %304 = vmatprep.subr.mxu0 0.0
        %305 = vmatpush1.msra.mxu0 %v279
        %306 = vmatprep.subr.mxu0 0.0
        %307 = vmatpush1.msra.mxu0 %v280
        %308 = vmatprep.subr.mxu0 0.0
        %309 = vmatpush1.msra.mxu0 %v281
        %310 = vmatprep.subr.mxu0 0.0
        %311 = vmatpush1.msra.mxu0 %v282
        %312 = vmatprep.subr.mxu0 0.0
        %313 = vmatpush1.msra.mxu0 0.0
        %314 = vmatprep.subr.mxu0 0.0
        %315 = vmatpush1.msra.mxu0 0.0
        %316 = vmatprep.subr.mxu0 0.0
        %317 = vmatpush1.msra.mxu0 0.0
        %318 = vmatprep.subr.mxu0 0.0
        %319 = vmatpush1.msra.mxu0 0.0
        %320 = vmatprep.subr.mxu0 0.0
        %321 = vmatpush1.msra.mxu0 0.0
        %322 = vmatprep.subr.mxu0 0.0
        %323 = vmatpush1.msra.mxu0 0.0
        %324 = vmatprep.subr.mxu0 0.0
        %325 = vmatpush1.msra.mxu0 0.0
        %326 = vmatprep.subr.mxu0 0.0
        %327 = vmatpush1.msra.mxu0 0.0
        %328 = vmatprep.subr.mxu0 0.0
        %329 = vmatpush1.msra.mxu0 0.0
        %330 = vmatprep.subr.mxu0 0.0
        %331 = vmatpush1.msra.mxu0 0.0
        %332 = vmatprep.subr.mxu0 0.0
        %333 = vmatpush1.msra.mxu0 0.0
        %334 = vmatprep.subr.mxu0 0.0
        %335 = vmatpush1.msra.mxu0 0.0
        %336 = vmatprep.subr.mxu0 0.0
        %337 = vmatpush1.msra.mxu0 0.0
        %338 = vmatprep.subr.mxu0 0.0
        %339 = vmatpush1.msra.mxu0 0.0
        %340 = vmatprep.subr.mxu0 0.0
        %341 = vmatpush1.msra.mxu0 0.0
        %342 = vmatprep.subr.mxu0 0.0
        %343 = vmatpush1.msra.mxu0 0.0
        %344 = vmatprep.subr.mxu0 0.0
        %345 = vmatpush1.msra.mxu0 0.0
        %346 = vmatprep.subr.mxu0 0.0
        %347 = vmatpush1.msra.mxu0 0.0
        %348 = vmatprep.subr.mxu0 0.0
        %349 = vmatpush1.msra.mxu0 0.0
        %350 = vmatprep.subr.mxu0 0.0
        %351 = vmatpush1.msra.mxu0 0.0
        %352 = vmatprep.subr.mxu0 0.0
        %353 = vmatpush1.msra.mxu0 0.0
        %354 = vmatprep.subr.mxu0 0.0
        %355 = vmatpush1.msra.mxu0 0.0
        %356 = vmatprep.subr.mxu0 0.0
        %357 = vmatpush1.msra.mxu0 0.0
        %358 = vmatprep.subr.mxu0 0.0
        %359 = vmatpush1.msra.mxu0 0.0
        %360 = vmatprep.mubr.f32.mxu0 0.0
        %361 = vmatmul.mubr.f32.gmra.mrb[0].mxu0 %v285
        %v362 = vpop.f32.mrb[0].mxu0
        %v363 = vadd.f32 0.0, %v362
        %v364 = vpop.f32.mrb[0].mxu0
        %365 = vmatprep.mubr.f32.mxu0 0.0
        %366 = vmatmul.mubr.f32.gmra.mrb[0].mxu0 %v288
        %v367 = vpop.f32.mrb[0].mxu0
        %v368 = vadd.f32 0.0, %v367
        %v369 = vpop.f32.mrb[0].mxu0
        %370 = vmatprep.mubr.f32.mxu0 0.0
        %371 = vmatmul.mubr.f32.gmra.mrb[0].mxu0 %v291
        %v372 = vpop.f32.mrb[0].mxu0
        %v373 = vadd.f32 0.0, %v372
        %v374 = vpop.f32.mrb[0].mxu0
        %375 = vmatprep.mubr.f32.mxu0 0.0
        %376 = vmatmul.mubr.f32.gmra.mrb[0].mxu0 %v294
        %v377 = vpop.f32.mrb[0].mxu0
        %v378 = vadd.f32 0.0, %v377
        %v379 = vpop.f32.mrb[0].mxu0
        %380 = vdwg.mxu0
        %381 = vst [vmem:[%s223] sm:$0xff] %v363
        %382 = vst [vmem:[%s223 + $0x8] sm:$0xff] %v368
        %383 = vst [vmem:[%s223 + $0x10] sm:$0xff] %v373
        %384 = vst [vmem:[%s223 + $0x18] sm:$0xff] %v378
        %v385 = vadd.f32 %v363, %v368
        %v386 = vadd.f32 %v385, %v373
        %v387 = vadd.f32 %v386, %v378
        %388 = vadd.xlane.f32.xlu0 %v387
        %v389 = vpop.xlane.xlu0 %388
        %v390 = vrot.slane %v389, 4
        %v391 = vadd.f32 %v389, %v390
        %v392 = vrot.slane %v391, 2
        %v393 = vadd.f32 %v391, %v392
        %v394 = vrot.slane %v393, 1
        %v395 = vadd.f32 %v393, %v394
        %s396 = vtos %v395
        %v397 = vmul.f32 %v363, %v363
        %v398 = vmul.f32 %v368, %v368
        %v399 = vmul.f32 %v373, %v373
        %v400 = vmul.f32 %v378, %v378
        %v401 = vadd.f32 %v397, %v398
        %v402 = vadd.f32 %v401, %v399
        %v403 = vadd.f32 %v402, %v400
        %404 = vadd.xlane.f32.xlu0 %v403
        %v405 = vpop.xlane.xlu0 %404
        %v406 = vrot.slane %v405, 4
        %v407 = vadd.f32 %v405, %v406
        %v408 = vrot.slane %v407, 2
        %v409 = vadd.f32 %v407, %v408
        %v410 = vrot.slane %v409, 1
        %v411 = vadd.f32 %v409, %v410
        %s412 = vtos %v411
        %v413 = vstv %s396
        %414 = vst [vmem:[%s230] sm:$0xff] %v413
        %v415 = vstv %s412
        %416 = vst [vmem:[%s237] sm:$0xff] %v415
        %s417 = sand.u32 %s100, 1
        %s418 = scalar_lea.sflag [#allocation4], %s417
        %s419 = sand.u32 %s100, 1
        %s420 = smul.addr %s419, 32
        %s421 = scalar_lea.vmem [#allocation3], %s420
        %s422 = sand.u32 %s24, 1
        %s423 = scalar_lea.sflag [#allocation6], %s422
        %s424 = sand.u32 %s126, 1
        %s425 = smul.addr %s424, 8
        %s426 = scalar_lea.vmem [#allocation5], %s425
        %s427 = sand.u32 %s24, 1
        %s428 = scalar_lea.sflag [#allocation6], %s427
        %s429 = sand.u32 %s152, 1
        %s430 = smul.addr %s429, 8
        %s431 = scalar_lea.vmem [#allocation7], %s430
        // Predicated region
        $region33: #{tpu_custom_call.1} parent=31 // pred_check
          %p432 = pneg %p110
        $region34: #{tpu_custom_call.1} parent=31 // pred_check_branch
          %434 = sbr.rel (%p432) target = $region36
        $region35: #{tpu_custom_call.1} parent=31 // pred_region
          %s435 = smul.u32 4, %s24
          %s437 = ssub.s32 512, 512
          %438 = vsyncadd %s418, %s437
          %s439 = smul.addr %s435, 128
          %s440 = scalar_lea.hbm %s3, %s439
          %s441 = sshll.u32 %s421, 4
          %s442 = int_to_ptr.vmem [resolvable:$true] %s441
          %447 = dma.vmem_to_hbm [thread:$0]  %s442, 512, %s440, %s418, 128, 128, 8
        $region36: #{tpu_custom_call.1} parent=31 // pred_fallthru
          _
        // Predicated region
        $region37: #{tpu_custom_call.1} parent=31 // pred_check
          %p448 = pneg %p136
        $region38: #{tpu_custom_call.1} parent=31 // pred_check_branch
          %450 = sbr.rel (%p448) target = $region40
        $region39: #{tpu_custom_call.1} parent=31 // pred_region
          %s452 = ssub.s32 128, 128
          %453 = vsyncadd %s423, %s452
          %s454 = smul.addr %s24, 128
          %s455 = scalar_lea.hbm %s4, %s454
          %s457 = sshll.u32 %s426, 4
          %s458 = int_to_ptr.vmem [resolvable:$true] %s457
          %460 = dma.vmem_to_hbm [thread:$0]  %s458, 128, %s455, %s423
        $region40: #{tpu_custom_call.1} parent=31 // pred_fallthru
          _
        // Predicated region
        $region41: #{tpu_custom_call.1} parent=31 // pred_check
          %p461 = pneg %p162
        $region42: #{tpu_custom_call.1} parent=31 // pred_check_branch
          %463 = sbr.rel (%p461) target = $region44
        $region43: #{tpu_custom_call.1} parent=31 // pred_region
          %s465 = ssub.s32 128, 128
          %466 = vsyncadd %s428, %s465
          %s467 = smul.addr %s24, 128
          %s468 = scalar_lea.hbm %s5, %s467
          %s470 = sshll.u32 %s431, 4
          %s471 = int_to_ptr.vmem [resolvable:$true] %s470
          %473 = dma.vmem_to_hbm [thread:$0]  %s471, 128, %s468, %s428
        $region44: #{tpu_custom_call.1} parent=31 // pred_fallthru
          _
      $region32: #{tpu_custom_call.1} parent=5 // pred_fallthru
        _
      %p474 = scmp.le.s32.totalorder 2, %s19
      // Predicated region
      $region45: #{tpu_custom_call.1} parent=5 // pred_check
        %p475 = pneg %p474
      $region46: #{tpu_custom_call.1} parent=5 // pred_check_branch
        %477 = sbr.rel (%p475) target = $region48
      $region47: #{tpu_custom_call.1} parent=5 // pred_region
        %s478 = ssub.s32 %s19, 2
        // Predicated region
        $region49: #{tpu_custom_call.1} parent=47 // pred_check
          %p479 = pneg %p116
        $region50: #{tpu_custom_call.1} parent=47 // pred_check_branch
          %481 = sbr.rel (%p479) target = $region52
        $region51: #{tpu_custom_call.1} parent=47 // pred_region
          %s482 = sand.u32 %s101, 1
          %s483 = scalar_lea.sflag [#allocation4], %s482
          %s484 = sand.u32 %s101, 1
          %s485 = smul.addr %s484, 32
          %s486 = scalar_lea.vmem [#allocation3], %s485
          %487 = dma.done %s483, 512
        $region52: #{tpu_custom_call.1} parent=47 // pred_fallthru
          _
        // Predicated region
        $region53: #{tpu_custom_call.1} parent=47 // pred_check
          %p488 = pneg %p142
        $region54: #{tpu_custom_call.1} parent=47 // pred_check_branch
          %490 = sbr.rel (%p488) target = $region56
        $region55: #{tpu_custom_call.1} parent=47 // pred_region
          %s491 = sand.u32 %s25, 1
          %s492 = scalar_lea.sflag [#allocation6], %s491
          %s493 = sand.u32 %s127, 1
          %s494 = smul.addr %s493, 8
          %s495 = scalar_lea.vmem [#allocation5], %s494
          %496 = dma.done %s492, 128
        $region56: #{tpu_custom_call.1} parent=47 // pred_fallthru
          _
        // Predicated region
        $region57: #{tpu_custom_call.1} parent=47 // pred_check
          %p497 = pneg %p168
        $region58: #{tpu_custom_call.1} parent=47 // pred_check_branch
          %499 = sbr.rel (%p497) target = $region60
        $region59: #{tpu_custom_call.1} parent=47 // pred_region
          %s500 = sand.u32 %s25, 1
          %s501 = scalar_lea.sflag [#allocation6], %s500
          %s502 = sand.u32 %s153, 1
          %s503 = smul.addr %s502, 8
          %s504 = scalar_lea.vmem [#allocation7], %s503
          %505 = dma.done %s501, 128
        $region60: #{tpu_custom_call.1} parent=47 // pred_fallthru
          _
      $region48: #{tpu_custom_call.1} parent=5 // pred_fallthru
        _
    $region6: #{tpu_custom_call.1} parent=1 // loop_footer
      %s23 = sadd.s32 1, %s19
    $region7: #{tpu_custom_call.1} parent=1 // loop_footer_branch
      %18 = sbr.rel target = $region3
    $region8: #{tpu_custom_call.1} parent=1 // loop_exit
      _
    %506 = vsyncpa [#allocation4], 1
    %s507 = scalar_lea.sflag [#allocation4], 1
    %508 = vsyncpa %s507, 1
    %509 = vsyncpa [#allocation6], 1
    %s510 = scalar_lea.sflag [#allocation6], 1
    %511 = vsyncpa %s510, 1

</llo_original>
